<compile_context>
chip_gen: v7x
topology: tpu7x:2x2x1
jax: 0.10.0
libtpu: 0.0.40
codegen_flags: <defaults>
</compile_context>

<pallas_src>
import jax
import jax.numpy as jnp
from jax.experimental import pallas as pl
from jax.experimental.pallas import tpu as pltpu


_VMEM_BUDGET_BYTES = 20 * 1024 * 1024   # conservative double-buffered budget (all gens)
_VMEM_LIMIT_BYTES = 48 * 1024 * 1024    # headroom below v7x's 64 MiB physical VMEM

# Last-dim (lane) tiles must be multiples of 128 (or the full dim);
# second-last (sublane) tiles must be multiples of 8 (or the full dim).
_LANE_TILES = (512, 256, 128)
_SUBLANE_TILES = (512, 256, 128, 64, 32, 16, 8)


def _fit_tile(dim, candidates):
    """Largest candidate that evenly divides `dim`; falls back to the full dim."""
    for c in candidates:
        if c <= dim and dim % c == 0:
            return c
    return dim


# ---------------------------------------------------------------------------
# Kernel 1: plain 2-D matmul  (M, K) @ (K, Np) -> (M, Np)
# ---------------------------------------------------------------------------
def _matmul_kernel(a_ref, b_ref, o_ref, acc_ref):
    @pl.when(pl.program_id(2) == 0)
    def _():
        acc_ref[...] = jnp.zeros_like(acc_ref)

    acc_ref[...] += jnp.dot(a_ref[...], b_ref[...],
                            preferred_element_type=jnp.float32)

    @pl.when(pl.program_id(2) == pl.num_programs(2) - 1)
    def _():
        o_ref[...] = acc_ref[...].astype(o_ref.dtype)


def _matmul2d(a, b):
    M, K = a.shape
    K2, Np = b.shape
    assert K == K2

    tm = _fit_tile(M, _SUBLANE_TILES)
    tn = _fit_tile(Np, _LANE_TILES)
    tk = _fit_tile(K, _LANE_TILES)

    cost = pl.CostEstimate(
        flops=2 * M * K * Np,
        transcendentals=0,
        bytes_accessed=4 * (M * K + K * Np + M * Np),
    )
    return pl.pallas_call(
        _matmul_kernel,
        out_shape=jax.ShapeDtypeStruct((M, Np), a.dtype),
        grid_spec=pltpu.PrefetchScalarGridSpec(
            num_scalar_prefetch=0,
            grid=(M // tm, Np // tn, K // tk),
            in_specs=[
                pl.BlockSpec((tm, tk), lambda i, j, k: (i, k)),
                pl.BlockSpec((tk, tn), lambda i, j, k: (k, j)),
            ],
            out_specs=pl.BlockSpec((tm, tn), lambda i, j, k: (i, j)),
            scratch_shapes=[pltpu.VMEM((tm, tn), jnp.float32)],
        ),
        compiler_params=pltpu.CompilerParams(
            dimension_semantics=("parallel", "parallel", "arbitrary"),
            vmem_limit_bytes=_VMEM_LIMIT_BYTES,
        ),
        cost_estimate=cost,
    )(a, b)


# ---------------------------------------------------------------------------
# Kernel 2: batched support matmul  out[b] = support[b] @ y[b]
# ---------------------------------------------------------------------------
def _batched_matmul_kernel(sup_ref, y_ref, o_ref, acc_ref):
    @pl.when(pl.program_id(3) == 0)
    def _():
        acc_ref[...] = jnp.zeros_like(acc_ref)

    # jnp.dot is not batched for 3-D operands -> einsum (lowers to MXU matmuls).
    acc_ref[...] += jnp.einsum(
        "bik,bkd->bid", sup_ref[...], y_ref[...],
        preferred_element_type=jnp.float32)

    @pl.when(pl.program_id(3) == pl.num_programs(3) - 1)
    def _():
        o_ref[...] = acc_ref[...].astype(o_ref.dtype)


def _batched_support_matmul(support, y):
    B, N, N2 = support.shape
    B2, N3, D = y.shape
    assert B == B2 and N == N2 and N == N3

    tm = _fit_tile(N, _SUBLANE_TILES)
    tk = _fit_tile(N, _LANE_TILES)
    tn = _fit_tile(D, _LANE_TILES)

    # Fuse as many batch elements per grid step as the VMEM budget allows
    # (amortizes per-step overhead when graphs are small).
    def vmem_bytes(bb):
        return 4 * (2 * bb * (tm * tk + tk * tn + tm * tn) + bb * tm * tn)

    Bb = 1
    for cand in range(B, 0, -1):
        if B % cand == 0 and vmem_bytes(cand) <= _VMEM_BUDGET_BYTES:
            Bb = cand
            break

    cost = pl.CostEstimate(
        flops=2 * B * N * N * D,
        transcendentals=0,
        bytes_accessed=4 * (B * N * N + 2 * B * N * D),
    )
    return pl.pallas_call(
        _batched_matmul_kernel,
        out_shape=jax.ShapeDtypeStruct((B, N, D), y.dtype),
        grid_spec=pltpu.PrefetchScalarGridSpec(
            num_scalar_prefetch=0,
            grid=(B // Bb, N // tm, D // tn, N // tk),
            in_specs=[
                pl.BlockSpec((Bb, tm, tk), lambda b, i, j, k: (b, i, k)),
                pl.BlockSpec((Bb, tk, tn), lambda b, i, j, k: (b, k, j)),
            ],
            out_specs=pl.BlockSpec((Bb, tm, tn), lambda b, i, j, k: (b, i, j)),
            scratch_shapes=[pltpu.VMEM((Bb, tm, tn), jnp.float32)],
        ),
        compiler_params=pltpu.CompilerParams(
            dimension_semantics=("parallel", "parallel", "parallel", "arbitrary"),
            vmem_limit_bytes=_VMEM_LIMIT_BYTES,
        ),
        cost_estimate=cost,
    )(support, y)


# ---------------------------------------------------------------------------
# GraphConvolution forward
# ---------------------------------------------------------------------------
def graph_convolution(x, support, w):
    """out[b] = (support[b] @ x[b]) @ w   (dropout_rate=0, bias=False, act=None)."""
    B, N, Din = x.shape
    Din2, Dout = w.shape
    assert Din == Din2
    assert support.shape == (B, N, N)

    # Lane-dense output: zero-pad Dout up to a multiple of 128; strip at the end.
    Dp = -(-Dout // 128) * 128
    w_p = w if Dp == Dout else jnp.pad(w, ((0, 0), (0, Dp - Dout)))

    if Dout <= Din:
        # Reassociate: out = support @ (x @ w)  -- fewer FLOPs on the N^2 term.
        xw = _matmul2d(x.reshape(B * N, Din), w_p).reshape(B, N, Dp)
        out_p = _batched_support_matmul(support, xw)
    else:
        pre = _batched_support_matmul(support, x)
        out_p = _matmul2d(pre.reshape(B * N, Din), w_p).reshape(B, N, Dp)

    return out_p if Dp == Dout else out_p[..., :Dout]


if __name__ == "__main__":
    # Small, deterministic example shapes.
    B, N, Din, Dout = 2, 16, 32, 32

    key = jax.random.PRNGKey(0)
    k_x, k_sup, k_w = jax.random.split(key, 3)

    x = jax.random.normal(k_x, (B, N, Din), dtype=jnp.float32)
    support = jax.random.normal(k_sup, (B, N, N), dtype=jnp.float32)
    # Parameter init mirrors nn.Parameter(torch.randn(input_dim, output_dim)).
    w = jax.random.normal(k_w, (Din, Dout), dtype=jnp.float32)

    out = jax.jit(graph_convolution)(x, support, w)
    out = jax.block_until_ready(out)

    # Pure-JAX reference check (reassociation changes rounding slightly).
    ref = jnp.einsum("bnm,bmd->bnd", support, x) @ w
    assert out.shape == (B, N, Dout)
    assert jnp.allclose(out, ref, atol=1e-3, rtol=1e-3)

    print("KERNEL_OK")
</pallas_src>

<mosaic_0001>
module attributes {stable_mosaic.version = 11 : i64} {
  func.func @_matmul_kernel(%arg0: i32, %arg1: i32, %arg2: i32, %arg3: memref<32x32xf32, #tpu.memory_space<vmem>>, %arg4: memref<32x128xf32, #tpu.memory_space<vmem>>, %arg5: memref<32x128xf32, #tpu.memory_space<vmem>>, %arg6: memref<32x128xf32, #tpu.memory_space<vmem>>) attributes {dimension_semantics = [#tpu.dimension_semantics<parallel>, #tpu.dimension_semantics<parallel>, #tpu.dimension_semantics<arbitrary>], iteration_bounds = array<i64: 1, 1, 1>, scalar_prefetch = 0 : i64, scratch_operands = 1 : i64, tpu.core_type = #tpu.core_type<tc>, window_params = [{transform_indices = @transform_0, window_bounds = array<i64: 32, 32>}, {transform_indices = @transform_1, window_bounds = array<i64: 32, 128>}, {transform_indices = @transform_2, window_bounds = array<i64: 32, 128>}]} {
    %c0_i32 = arith.constant 0 : i32
    %0 = arith.cmpi eq, %arg2, %c0_i32 : i32
    %1 = arith.extui %0 : i1 to i32
    %c0_i32_0 = arith.constant 0 : i32
    %2 = arith.cmpi ne, %1, %c0_i32_0 : i32
    scf.if %2 {
      %cst_10 = arith.constant 0.000000e+00 : f32
      %12 = vector.broadcast %cst_10 : f32 to vector<32x128xf32>
      %c0_11 = arith.constant 0 : index
      %c0_12 = arith.constant 0 : index
      %13 = vector.load %arg6[%c0_11, %c0_12] : memref<32x128xf32, #tpu.memory_space<vmem>>, vector<32x128xf32>
      tpu.vector_store %arg6[%c0_11, %c0_12], %12 {strides = array<i32>} : memref<32x128xf32, #tpu.memory_space<vmem>>, vector<32x128xf32>,
    } else {
    }
    %c0 = arith.constant 0 : index
    %c0_1 = arith.constant 0 : index
    %3 = vector.load %arg6[%c0, %c0_1] : memref<32x128xf32, #tpu.memory_space<vmem>>, vector<32x128xf32>
    %c0_2 = arith.constant 0 : index
    %c0_3 = arith.constant 0 : index
    %4 = vector.load %arg3[%c0_2, %c0_3] : memref<32x32xf32, #tpu.memory_space<vmem>>, vector<32x32xf32>
    %c0_4 = arith.constant 0 : index
    %c0_5 = arith.constant 0 : index
    %5 = vector.load %arg4[%c0_4, %c0_5] : memref<32x128xf32, #tpu.memory_space<vmem>>, vector<32x128xf32>
    %cst = arith.constant dense<0.000000e+00> : vector<32x128xf32>
    %6 = tpu.matmul %4, %5, %cst {dimension_numbers = #tpu.dot_dimension_numbers<[1], [0], [0], [1], [0, 0, 1, 1], [], []>} : vector<32x32xf32>, vector<32x128xf32>, vector<32x128xf32> -> vector<32x128xf32>
    %7 = arith.addf %3, %6 : vector<32x128xf32>
    %c0_6 = arith.constant 0 : index
    %c0_7 = arith.constant 0 : index
    %8 = vector.load %arg6[%c0_6, %c0_7] : memref<32x128xf32, #tpu.memory_space<vmem>>, vector<32x128xf32>
    tpu.vector_store %arg6[%c0_6, %c0_7], %7 {strides = array<i32>} : memref<32x128xf32, #tpu.memory_space<vmem>>, vector<32x128xf32>,
    %c0_i32_8 = arith.constant 0 : i32
    %9 = arith.cmpi eq, %arg2, %c0_i32_8 : i32
    %10 = arith.extui %9 : i1 to i32
    %c0_i32_9 = arith.constant 0 : i32
    %11 = arith.cmpi ne, %10, %c0_i32_9 : i32
    scf.if %11 {
      %c0_10 = arith.constant 0 : index
      %c0_11 = arith.constant 0 : index
      %12 = vector.load %arg6[%c0_10, %c0_11] : memref<32x128xf32, #tpu.memory_space<vmem>>, vector<32x128xf32>
      %c0_12 = arith.constant 0 : index
      %c0_13 = arith.constant 0 : index
      %13 = vector.load %arg5[%c0_12, %c0_13] : memref<32x128xf32, #tpu.memory_space<vmem>>, vector<32x128xf32>
      tpu.vector_store %arg5[%c0_12, %c0_13], %12 {strides = array<i32>} : memref<32x128xf32, #tpu.memory_space<vmem>>, vector<32x128xf32>,
    } else {
    }
    return
  }
  func.func @transform_0(%arg0: i32, %arg1: i32, %arg2: i32) -> (i32, i32) {
    %c0_i32 = arith.constant 0 : i32
    return %arg0, %arg2 : i32, i32
  }
  func.func @transform_1(%arg0: i32, %arg1: i32, %arg2: i32) -> (i32, i32) {
    %c0_i32 = arith.constant 0 : i32
    return %arg2, %arg1 : i32, i32
  }
  func.func @transform_2(%arg0: i32, %arg1: i32, %arg2: i32) -> (i32, i32) {
    %c0_i32 = arith.constant 0 : i32
    return %arg0, %arg1 : i32, i32
  }
}

module attributes {stable_mosaic.version = 11 : i64} {
  func.func @_batched_matmul_kernel(%arg0: i32, %arg1: i32, %arg2: i32, %arg3: i32, %arg4: memref<2x16x16xf32, #tpu.memory_space<vmem>>, %arg5: memref<2x16x128xf32, #tpu.memory_space<vmem>>, %arg6: memref<2x16x128xf32, #tpu.memory_space<vmem>>, %arg7: memref<2x16x128xf32, #tpu.memory_space<vmem>>) attributes {dimension_semantics = [#tpu.dimension_semantics<parallel>, #tpu.dimension_semantics<parallel>, #tpu.dimension_semantics<parallel>, #tpu.dimension_semantics<arbitrary>], iteration_bounds = array<i64: 1, 1, 1, 1>, scalar_prefetch = 0 : i64, scratch_operands = 1 : i64, tpu.core_type = #tpu.core_type<tc>, window_params = [{transform_indices = @transform_0, window_bounds = array<i64: 2, 16, 16>}, {transform_indices = @transform_1, window_bounds = array<i64: 2, 16, 128>}, {transform_indices = @transform_2, window_bounds = array<i64: 2, 16, 128>}]} {
    %c0_i32 = arith.constant 0 : i32
    %0 = arith.cmpi eq, %arg3, %c0_i32 : i32
    %1 = arith.extui %0 : i1 to i32
    %c0_i32_0 = arith.constant 0 : i32
    %2 = arith.cmpi ne, %1, %c0_i32_0 : i32
    scf.if %2 {
      %cst_14 = arith.constant 0.000000e+00 : f32
      %12 = vector.broadcast %cst_14 : f32 to vector<2x16x128xf32>
      %c0_15 = arith.constant 0 : index
      %c0_16 = arith.constant 0 : index
      %c0_17 = arith.constant 0 : index
      %13 = vector.load %arg7[%c0_15, %c0_16, %c0_17] : memref<2x16x128xf32, #tpu.memory_space<vmem>>, vector<2x16x128xf32>
      tpu.vector_store %arg7[%c0_15, %c0_16, %c0_17], %12 {strides = array<i32>} : memref<2x16x128xf32, #tpu.memory_space<vmem>>, vector<2x16x128xf32>,
    } else {
    }
    %c0 = arith.constant 0 : index
    %c0_1 = arith.constant 0 : index
    %c0_2 = arith.constant 0 : index
    %3 = vector.load %arg7[%c0, %c0_1, %c0_2] : memref<2x16x128xf32, #tpu.memory_space<vmem>>, vector<2x16x128xf32>
    %c0_3 = arith.constant 0 : index
    %c0_4 = arith.constant 0 : index
    %c0_5 = arith.constant 0 : index
    %4 = vector.load %arg4[%c0_3, %c0_4, %c0_5] : memref<2x16x16xf32, #tpu.memory_space<vmem>>, vector<2x16x16xf32>
    %c0_6 = arith.constant 0 : index
    %c0_7 = arith.constant 0 : index
    %c0_8 = arith.constant 0 : index
    %5 = vector.load %arg5[%c0_6, %c0_7, %c0_8] : memref<2x16x128xf32, #tpu.memory_space<vmem>>, vector<2x16x128xf32>
    "tpu.trace_start"() <{level = 10 : i32, message = "bik,bkd->bid"}> : () -> ()
    %cst = arith.constant dense<0.000000e+00> : vector<2x16x128xf32>
    %6 = tpu.matmul %4, %5, %cst {dimension_numbers = #tpu.dot_dimension_numbers<[2], [1], [1], [2], [0, 0, 0, 1, 1, 2], [0], [0]>} : vector<2x16x16xf32>, vector<2x16x128xf32>, vector<2x16x128xf32> -> vector<2x16x128xf32>
    "tpu.trace_stop"() : () -> ()
    %7 = arith.addf %3, %6 : vector<2x16x128xf32>
    %c0_9 = arith.constant 0 : index
    %c0_10 = arith.constant 0 : index
    %c0_11 = arith.constant 0 : index
    %8 = vector.load %arg7[%c0_9, %c0_10, %c0_11] : memref<2x16x128xf32, #tpu.memory_space<vmem>>, vector<2x16x128xf32>
    tpu.vector_store %arg7[%c0_9, %c0_10, %c0_11], %7 {strides = array<i32>} : memref<2x16x128xf32, #tpu.memory_space<vmem>>, vector<2x16x128xf32>,
    %c0_i32_12 = arith.constant 0 : i32
    %9 = arith.cmpi eq, %arg3, %c0_i32_12 : i32
    %10 = arith.extui %9 : i1 to i32
    %c0_i32_13 = arith.constant 0 : i32
    %11 = arith.cmpi ne, %10, %c0_i32_13 : i32
    scf.if %11 {
      %c0_14 = arith.constant 0 : index
      %c0_15 = arith.constant 0 : index
      %c0_16 = arith.constant 0 : index
      %12 = vector.load %arg7[%c0_14, %c0_15, %c0_16] : memref<2x16x128xf32, #tpu.memory_space<vmem>>, vector<2x16x128xf32>
      %c0_17 = arith.constant 0 : index
      %c0_18 = arith.constant 0 : index
      %c0_19 = arith.constant 0 : index
      %13 = vector.load %arg6[%c0_17, %c0_18, %c0_19] : memref<2x16x128xf32, #tpu.memory_space<vmem>>, vector<2x16x128xf32>
      tpu.vector_store %arg6[%c0_17, %c0_18, %c0_19], %12 {strides = array<i32>} : memref<2x16x128xf32, #tpu.memory_space<vmem>>, vector<2x16x128xf32>,
    } else {
    }
    return
  }
  func.func @transform_0(%arg0: i32, %arg1: i32, %arg2: i32, %arg3: i32) -> (i32, i32, i32) {
    %c0_i32 = arith.constant 0 : i32
    return %arg0, %arg1, %arg3 : i32, i32, i32
  }
  func.func @transform_1(%arg0: i32, %arg1: i32, %arg2: i32, %arg3: i32) -> (i32, i32, i32) {
    %c0_i32 = arith.constant 0 : i32
    return %arg0, %arg3, %arg2 : i32, i32, i32
  }
  func.func @transform_2(%arg0: i32, %arg1: i32, %arg2: i32, %arg3: i32) -> (i32, i32, i32) {
    %c0_i32 = arith.constant 0 : i32
    return %arg0, %arg1, %arg2 : i32, i32, i32
  }
}

</mosaic_0001>

<llo_original>
// kernel: graph_convolution.3
$region0: #{graph_convolution.3}
  #allocation0 [shape = 'u32[]', space=smem, size = 0x4, offset = 0x4, fixed_abs, tag = 'smem constant byte address 0x4 - core index']
  #allocation1 [shape = 'u32[144,128]{1,0:T(1,128)}', space=vmem, size = 0x12000, scoped, tag = 'internal scratch']
  #allocation2 [shape = 'f32[2,16,128]{2,1,0:T(8,128)}', space=vmem, size = 0x4000, scoped, tag = 'scratch operand']
  %s0 = inlined_call_operand.vmem [shape: f32[2,16,16], index: 0, kind: input, shape index: {}]
  %s1 = inlined_call_operand.vmem [shape: f32[2,16,128], index: 1, kind: input, shape index: {}]
  %s2 = inlined_call_operand.hbm [shape: f32[2,16,128], index: 2, kind: output, shape index: {}]
  %s3 = sld [smem:[#allocation0]]
  $region26: #{graph_convolution.3} parent=0
    _
  %s5 = ssub.s32 1, %s3
  %s6 = scalar_select 0, %s5, %s3
  $region1: #{graph_convolution.3} parent=0
    #allocation3 [shape = 'u8[16384]{0}', space=vmem, size = 0x4000, scoped, tag = 'output window, operand 0, single buffered']
    #allocation4 [shape = 's32[1]{0}', space=sflag, size = 0x4, scoped, tag = 'scoped memory for graph_convolution.3']
    %7 = vsyncpa [#allocation4], 0
    // Predicated region
    $region2: #{graph_convolution.3} parent=1 // pred_check
      _
    $region3: #{graph_convolution.3} parent=1 // pred_check_branch
      %9 = sbr.rel (0) target = $region5
    $region4: #{graph_convolution.3} parent=1 // pred_region
      _
    $region5: #{graph_convolution.3} parent=1 // pred_fallthru
      _
    // Predicated region
    $region6: #{graph_convolution.3} parent=1 // pred_check
      _
    $region7: #{graph_convolution.3} parent=1 // pred_check_branch
      %11 = sbr.rel (0) target = $region9
    $region8: #{graph_convolution.3} parent=1 // pred_region
      _
    $region9: #{graph_convolution.3} parent=1 // pred_fallthru
      _
    %p12 = scmp.eq.s32.totalorder 0, 0
    // Predicated region
    $region10: #{graph_convolution.3} parent=1 // pred_check
      %p13 = pneg %p12
    $region11: #{graph_convolution.3} parent=1 // pred_check_branch
      %15 = sbr.rel (%p13) target = $region13
    $region12: #{graph_convolution.3} parent=1 // pred_region
      %16 = vst [vmem:[#allocation2] sm:$0xff] 0.0
      %17 = vst [vmem:[#allocation2 + $0x8] sm:$0xff] 0.0
      %18 = vst [vmem:[#allocation2 + $0x10] sm:$0xff] 0.0
      %19 = vst [vmem:[#allocation2 + $0x18] sm:$0xff] 0.0
    $region13: #{graph_convolution.3} parent=1 // pred_fallthru
      _
    %v20 = vld [vmem:[#allocation2] sm:$0xff]
    %v21 = vld [vmem:[#allocation2 + $0x8] sm:$0xff]
    %v22 = vld [vmem:[#allocation2 + $0x10] sm:$0xff]
    %v23 = vld [vmem:[#allocation2 + $0x18] sm:$0xff]
    %v24 = vld [vmem:[%s0] sm:$0xff]
    %v25 = vld [vmem:[%s0 + $0x8] sm:$0xff]
    %v26 = vld [vmem:[%s0 + $0x10] sm:$0xff]
    %v27 = vld [vmem:[%s0 + $0x18] sm:$0xff]
    %v28 = vld [vmem:[%s1] sm:$0xff]
    %v29 = vld [vmem:[%s1 + $0x8] sm:$0xff]
    %v30 = vld [vmem:[%s1 + $0x10] sm:$0xff]
    %v31 = vld [vmem:[%s1 + $0x18] sm:$0xff]
    %vm32 = vcmask 130048
    %v34 = vsel %vm32, %v24, 0
    %v37 = vsel %vm32, %v25, 0
    %39 = vmatprep.subr.mxu0 0.0
    %40 = vmatpush1.msra.mxu0 %v28
    %41 = vmatprep.subr.mxu0 0.0
    %42 = vmatpush1.msra.mxu0 %v29
    %43 = vmatprep.subr.mxu0 0.0
    %44 = vmatpush1.msra.mxu0 0.0
    %45 = vmatprep.subr.mxu0 0.0
    %46 = vmatpush1.msra.mxu0 0.0
    %47 = vmatprep.subr.mxu0 0.0
    %48 = vmatpush1.msra.mxu0 0.0
    %49 = vmatprep.subr.mxu0 0.0
    %50 = vmatpush1.msra.mxu0 0.0
    %51 = vmatprep.subr.mxu0 0.0
    %52 = vmatpush1.msra.mxu0 0.0
    %53 = vmatprep.subr.mxu0 0.0
    %54 = vmatpush1.msra.mxu0 0.0
    %55 = vmatprep.subr.mxu0 0.0
    %56 = vmatpush1.msra.mxu0 0.0
    %57 = vmatprep.subr.mxu0 0.0
    %58 = vmatpush1.msra.mxu0 0.0
    %59 = vmatprep.subr.mxu0 0.0
    %60 = vmatpush1.msra.mxu0 0.0
    %61 = vmatprep.subr.mxu0 0.0
    %62 = vmatpush1.msra.mxu0 0.0
    %63 = vmatprep.subr.mxu0 0.0
    %64 = vmatpush1.msra.mxu0 0.0
    %65 = vmatprep.subr.mxu0 0.0
    %66 = vmatpush1.msra.mxu0 0.0
    %67 = vmatprep.subr.mxu0 0.0
    %68 = vmatpush1.msra.mxu0 0.0
    %69 = vmatprep.subr.mxu0 0.0
    %70 = vmatpush1.msra.mxu0 0.0
    %71 = vmatprep.subr.mxu0 0.0
    %72 = vmatpush1.msra.mxu0 0.0
    %73 = vmatprep.subr.mxu0 0.0
    %74 = vmatpush1.msra.mxu0 0.0
    %75 = vmatprep.subr.mxu0 0.0
    %76 = vmatpush1.msra.mxu0 0.0
    %77 = vmatprep.subr.mxu0 0.0
    %78 = vmatpush1.msra.mxu0 0.0
    %79 = vmatprep.subr.mxu0 0.0
    %80 = vmatpush1.msra.mxu0 0.0
    %81 = vmatprep.subr.mxu0 0.0
    %82 = vmatpush1.msra.mxu0 0.0
    %83 = vmatprep.subr.mxu0 0.0
    %84 = vmatpush1.msra.mxu0 0.0
    %85 = vmatprep.subr.mxu0 0.0
    %86 = vmatpush1.msra.mxu0 0.0
    %87 = vmatprep.subr.mxu0 0.0
    %88 = vmatpush1.msra.mxu0 0.0
    %89 = vmatprep.subr.mxu0 0.0
    %90 = vmatpush1.msra.mxu0 0.0
    %91 = vmatprep.subr.mxu0 0.0
    %92 = vmatpush1.msra.mxu0 0.0
    %93 = vmatprep.subr.mxu0 0.0
    %94 = vmatpush1.msra.mxu0 0.0
    %95 = vmatprep.subr.mxu0 0.0
    %96 = vmatpush1.msra.mxu0 0.0
    %97 = vmatprep.subr.mxu0 0.0
    %98 = vmatpush1.msra.mxu0 0.0
    %99 = vmatprep.subr.mxu0 0.0
    %100 = vmatpush1.msra.mxu0 0.0
    %101 = vmatprep.subr.mxu0 0.0
    %102 = vmatpush1.msra.mxu0 0.0
    %103 = vmatprep.mubr.f32.mxu0 0.0
    %104 = vmatmul.mubr.f32.gmra.mrb[0].mxu0 %v34
    %v105 = vpop.f32.mrb[0].mxu0
    %v106 = vadd.f32 0.0, %v105
    %v107 = vpop.f32.mrb[0].mxu0
    %108 = vmatprep.mubr.f32.mxu0 0.0
    %109 = vmatmul.mubr.f32.gmra.mrb[0].mxu0 %v37
    %v110 = vpop.f32.mrb[0].mxu0
    %v111 = vadd.f32 0.0, %v110
    %v112 = vpop.f32.mrb[0].mxu0
    %113 = vdwg.mxu0
    %v115 = vsel %vm32, %v26, 0
    %v118 = vsel %vm32, %v27, 0
    %120 = vmatprep.subr.mxu0 0.0
    %121 = vmatpush1.msra.mxu0 %v30
    %122 = vmatprep.subr.mxu0 0.0
    %123 = vmatpush1.msra.mxu0 %v31
    %124 = vmatprep.subr.mxu0 0.0
    %125 = vmatpush1.msra.mxu0 0.0
    %126 = vmatprep.subr.mxu0 0.0
    %127 = vmatpush1.msra.mxu0 0.0
    %128 = vmatprep.subr.mxu0 0.0
    %129 = vmatpush1.msra.mxu0 0.0
    %130 = vmatprep.subr.mxu0 0.0
    %131 = vmatpush1.msra.mxu0 0.0
    %132 = vmatprep.subr.mxu0 0.0
    %133 = vmatpush1.msra.mxu0 0.0
    %134 = vmatprep.subr.mxu0 0.0
    %135 = vmatpush1.msra.mxu0 0.0
    %136 = vmatprep.subr.mxu0 0.0
    %137 = vmatpush1.msra.mxu0 0.0
    %138 = vmatprep.subr.mxu0 0.0
    %139 = vmatpush1.msra.mxu0 0.0
    %140 = vmatprep.subr.mxu0 0.0
    %141 = vmatpush1.msra.mxu0 0.0
    %142 = vmatprep.subr.mxu0 0.0
    %143 = vmatpush1.msra.mxu0 0.0
    %144 = vmatprep.subr.mxu0 0.0
    %145 = vmatpush1.msra.mxu0 0.0
    %146 = vmatprep.subr.mxu0 0.0
    %147 = vmatpush1.msra.mxu0 0.0
    %148 = vmatprep.subr.mxu0 0.0
    %149 = vmatpush1.msra.mxu0 0.0
    %150 = vmatprep.subr.mxu0 0.0
    %151 = vmatpush1.msra.mxu0 0.0
    %152 = vmatprep.subr.mxu0 0.0
    %153 = vmatpush1.msra.mxu0 0.0
    %154 = vmatprep.subr.mxu0 0.0
    %155 = vmatpush1.msra.mxu0 0.0
    %156 = vmatprep.subr.mxu0 0.0
    %157 = vmatpush1.msra.mxu0 0.0
    %158 = vmatprep.subr.mxu0 0.0
    %159 = vmatpush1.msra.mxu0 0.0
    %160 = vmatprep.subr.mxu0 0.0
    %161 = vmatpush1.msra.mxu0 0.0
    %162 = vmatprep.subr.mxu0 0.0
    %163 = vmatpush1.msra.mxu0 0.0
    %164 = vmatprep.subr.mxu0 0.0
    %165 = vmatpush1.msra.mxu0 0.0
    %166 = vmatprep.subr.mxu0 0.0
    %167 = vmatpush1.msra.mxu0 0.0
    %168 = vmatprep.subr.mxu0 0.0
    %169 = vmatpush1.msra.mxu0 0.0
    %170 = vmatprep.subr.mxu0 0.0
    %171 = vmatpush1.msra.mxu0 0.0
    %172 = vmatprep.subr.mxu0 0.0
    %173 = vmatpush1.msra.mxu0 0.0
    %174 = vmatprep.subr.mxu0 0.0
    %175 = vmatpush1.msra.mxu0 0.0
    %176 = vmatprep.subr.mxu0 0.0
    %177 = vmatpush1.msra.mxu0 0.0
    %178 = vmatprep.subr.mxu0 0.0
    %179 = vmatpush1.msra.mxu0 0.0
    %180 = vmatprep.subr.mxu0 0.0
    %181 = vmatpush1.msra.mxu0 0.0
    %182 = vmatprep.subr.mxu0 0.0
    %183 = vmatpush1.msra.mxu0 0.0
    %184 = vmatprep.mubr.f32.mxu0 0.0
    %185 = vmatmul.mubr.f32.gmra.mrb[0].mxu0 %v115
    %v186 = vpop.f32.mrb[0].mxu0
    %v187 = vadd.f32 0.0, %v186
    %v188 = vpop.f32.mrb[0].mxu0
    %189 = vmatprep.mubr.f32.mxu0 0.0
    %190 = vmatmul.mubr.f32.gmra.mrb[0].mxu0 %v118
    %v191 = vpop.f32.mrb[0].mxu0
    %v192 = vadd.f32 0.0, %v191
    %v193 = vpop.f32.mrb[0].mxu0
    %194 = vdwg.mxu0
    %v195 = vadd.f32 %v20, %v106
    %v196 = vadd.f32 %v21, %v111
    %v197 = vadd.f32 %v22, %v187
    %v198 = vadd.f32 %v23, %v192
    %199 = vst [vmem:[#allocation2] sm:$0xff] %v195
    %200 = vst [vmem:[#allocation2 + $0x8] sm:$0xff] %v196
    %201 = vst [vmem:[#allocation2 + $0x10] sm:$0xff] %v197
    %202 = vst [vmem:[#allocation2 + $0x18] sm:$0xff] %v198
    // Predicated region
    $region14: #{graph_convolution.3} parent=1 // pred_check
      %p203 = pneg %p12
    $region15: #{graph_convolution.3} parent=1 // pred_check_branch
      %205 = sbr.rel (%p203) target = $region17
    $region16: #{graph_convolution.3} parent=1 // pred_region
      %v206 = vld [vmem:[#allocation2] sm:$0xff]
      %v207 = vld [vmem:[#allocation2 + $0x8] sm:$0xff]
      %v208 = vld [vmem:[#allocation2 + $0x10] sm:$0xff]
      %v209 = vld [vmem:[#allocation2 + $0x18] sm:$0xff]
      %210 = vst [vmem:[#allocation3] sm:$0xff] %v206
      %211 = vst [vmem:[#allocation3 + $0x8] sm:$0xff] %v207
      %212 = vst [vmem:[#allocation3 + $0x10] sm:$0xff] %v208
      %213 = vst [vmem:[#allocation3 + $0x18] sm:$0xff] %v209
    $region17: #{graph_convolution.3} parent=1 // pred_fallthru
      _
    // Predicated region
    $region18: #{graph_convolution.3} parent=1 // pred_check
      _
    $region19: #{graph_convolution.3} parent=1 // pred_check_branch
      %215 = sbr.rel (0) target = $region21
    $region20: #{graph_convolution.3} parent=1 // pred_region
      %s217 = ssub.s32 512, 512
      %218 = vsyncadd [#allocation4], %s217
      %s219 = sshll.u32 [#allocation3], 4
      %s220 = int_to_ptr.vmem [resolvable:$true] %s219
      %225 = dma.vmem_to_hbm [thread:$0]  %s220, 512, %s2, [#allocation4], 128, 128, 8
    $region21: #{graph_convolution.3} parent=1 // pred_fallthru
      _
    // Predicated region
    $region22: #{graph_convolution.3} parent=1 // pred_check
      _
    $region23: #{graph_convolution.3} parent=1 // pred_check_branch
      %227 = sbr.rel (0) target = $region25
    $region24: #{graph_convolution.3} parent=1 // pred_region
      %228 = dma.done [#allocation4], 512
    $region25: #{graph_convolution.3} parent=1 // pred_fallthru
      _
    %229 = vsyncpa [#allocation4], 1

// kernel: graph_convolution.2
$region0: #{graph_convolution.2}
  #allocation0 [shape = 'u32[]', space=smem, size = 0x4, offset = 0x4, fixed_abs, tag = 'smem constant byte address 0x4 - core index']
  #allocation1 [shape = 'u32[144,128]{1,0:T(1,128)}', space=vmem, size = 0x12000, scoped, tag = 'internal scratch']
  #allocation2 [shape = 'f32[32,128]{1,0:T(8,128)}', space=vmem, size = 0x4000, scoped, tag = 'scratch operand']
  %s0 = inlined_call_operand.vmem [shape: f32[32,32], index: 0, kind: input, shape index: {}]
  %s1 = inlined_call_operand.vmem [shape: f32[32,128], index: 1, kind: input, shape index: {}]
  %s2 = inlined_call_operand.vmem [shape: f32[32,128], index: 2, kind: output, shape index: {}]
  %s3 = sld [smem:[#allocation0]]
  $region26: #{graph_convolution.2} parent=0
    _
  %s5 = ssub.s32 1, %s3
  %s6 = scalar_select 0, %s5, %s3
  // Predicated region
  $region2: #{graph_convolution.2} parent=0 // pred_check
    _
  $region3: #{graph_convolution.2} parent=0 // pred_check_branch
    %8 = sbr.rel (0) target = $region5
  $region4: #{graph_convolution.2} parent=0 // pred_region
    _
  $region5: #{graph_convolution.2} parent=0 // pred_fallthru
    _
  // Predicated region
  $region6: #{graph_convolution.2} parent=0 // pred_check
    _
  $region7: #{graph_convolution.2} parent=0 // pred_check_branch
    %10 = sbr.rel (0) target = $region9
  $region8: #{graph_convolution.2} parent=0 // pred_region
    _
  $region9: #{graph_convolution.2} parent=0 // pred_fallthru
    _
  %p11 = scmp.eq.s32.totalorder 0, 0
  // Predicated region
  $region10: #{graph_convolution.2} parent=0 // pred_check
    %p12 = pneg %p11
  $region11: #{graph_convolution.2} parent=0 // pred_check_branch
    %14 = sbr.rel (%p12) target = $region13
  $region12: #{graph_convolution.2} parent=0 // pred_region
    %15 = vst [vmem:[#allocation2] sm:$0xff] 0.0
    %16 = vst [vmem:[#allocation2 + $0x8] sm:$0xff] 0.0
    %17 = vst [vmem:[#allocation2 + $0x10] sm:$0xff] 0.0
    %18 = vst [vmem:[#allocation2 + $0x18] sm:$0xff] 0.0
  $region13: #{graph_convolution.2} parent=0 // pred_fallthru
    _
  %v19 = vld [vmem:[#allocation2] sm:$0xff]
  %v20 = vld [vmem:[#allocation2 + $0x8] sm:$0xff]
  %v21 = vld [vmem:[#allocation2 + $0x10] sm:$0xff]
  %v22 = vld [vmem:[#allocation2 + $0x18] sm:$0xff]
  %v23 = vld [vmem:[%s0] sm:$0xff]
  %v24 = vld [vmem:[%s0 + $0x8] sm:$0xff]
  %v25 = vld [vmem:[%s0 + $0x10] sm:$0xff]
  %v26 = vld [vmem:[%s0 + $0x18] sm:$0xff]
  %v27 = vld [vmem:[%s1] sm:$0xff]
  %v28 = vld [vmem:[%s1 + $0x8] sm:$0xff]
  %v29 = vld [vmem:[%s1 + $0x10] sm:$0xff]
  %v30 = vld [vmem:[%s1 + $0x18] sm:$0xff]
  %vm31 = vcmask 261120
  %v33 = vsel %vm31, %v23, 0
  %v36 = vsel %vm31, %v24, 0
  %v39 = vsel %vm31, %v25, 0
  %v42 = vsel %vm31, %v26, 0
  %44 = vmatprep.subr.mxu0 0.0
  %45 = vmatpush1.msra.mxu0 %v27
  %46 = vmatprep.subr.mxu0 0.0
  %47 = vmatpush1.msra.mxu0 %v28
  %48 = vmatprep.subr.mxu0 0.0
  %49 = vmatpush1.msra.mxu0 %v29
  %50 = vmatprep.subr.mxu0 0.0
  %51 = vmatpush1.msra.mxu0 %v30
  %52 = vmatprep.subr.mxu0 0.0
  %53 = vmatpush1.msra.mxu0 0.0
  %54 = vmatprep.subr.mxu0 0.0
  %55 = vmatpush1.msra.mxu0 0.0
  %56 = vmatprep.subr.mxu0 0.0
  %57 = vmatpush1.msra.mxu0 0.0
  %58 = vmatprep.subr.mxu0 0.0
  %59 = vmatpush1.msra.mxu0 0.0
  %60 = vmatprep.subr.mxu0 0.0
  %61 = vmatpush1.msra.mxu0 0.0
  %62 = vmatprep.subr.mxu0 0.0
  %63 = vmatpush1.msra.mxu0 0.0
  %64 = vmatprep.subr.mxu0 0.0
  %65 = vmatpush1.msra.mxu0 0.0
  %66 = vmatprep.subr.mxu0 0.0
  %67 = vmatpush1.msra.mxu0 0.0
  %68 = vmatprep.subr.mxu0 0.0
  %69 = vmatpush1.msra.mxu0 0.0
  %70 = vmatprep.subr.mxu0 0.0
  %71 = vmatpush1.msra.mxu0 0.0
  %72 = vmatprep.subr.mxu0 0.0
  %73 = vmatpush1.msra.mxu0 0.0
  %74 = vmatprep.subr.mxu0 0.0
  %75 = vmatpush1.msra.mxu0 0.0
  %76 = vmatprep.subr.mxu0 0.0
  %77 = vmatpush1.msra.mxu0 0.0
  %78 = vmatprep.subr.mxu0 0.0
  %79 = vmatpush1.msra.mxu0 0.0
  %80 = vmatprep.subr.mxu0 0.0
  %81 = vmatpush1.msra.mxu0 0.0
  %82 = vmatprep.subr.mxu0 0.0
  %83 = vmatpush1.msra.mxu0 0.0
  %84 = vmatprep.subr.mxu0 0.0
  %85 = vmatpush1.msra.mxu0 0.0
  %86 = vmatprep.subr.mxu0 0.0
  %87 = vmatpush1.msra.mxu0 0.0
  %88 = vmatprep.subr.mxu0 0.0
  %89 = vmatpush1.msra.mxu0 0.0
  %90 = vmatprep.subr.mxu0 0.0
  %91 = vmatpush1.msra.mxu0 0.0
  %92 = vmatprep.subr.mxu0 0.0
  %93 = vmatpush1.msra.mxu0 0.0
  %94 = vmatprep.subr.mxu0 0.0
  %95 = vmatpush1.msra.mxu0 0.0
  %96 = vmatprep.subr.mxu0 0.0
  %97 = vmatpush1.msra.mxu0 0.0
  %98 = vmatprep.subr.mxu0 0.0
  %99 = vmatpush1.msra.mxu0 0.0
  %100 = vmatprep.subr.mxu0 0.0
  %101 = vmatpush1.msra.mxu0 0.0
  %102 = vmatprep.subr.mxu0 0.0
  %103 = vmatpush1.msra.mxu0 0.0
  %104 = vmatprep.subr.mxu0 0.0
  %105 = vmatpush1.msra.mxu0 0.0
  %106 = vmatprep.subr.mxu0 0.0
  %107 = vmatpush1.msra.mxu0 0.0
  %108 = vmatprep.mubr.f32.mxu0 0.0
  %109 = vmatmul.mubr.f32.gmra.mrb[0].mxu0 %v33
  %v110 = vpop.f32.mrb[0].mxu0
  %v111 = vadd.f32 0.0, %v110
  %v112 = vpop.f32.mrb[0].mxu0
  %113 = vmatprep.mubr.f32.mxu0 0.0
  %114 = vmatmul.mubr.f32.gmra.mrb[0].mxu0 %v36
  %v115 = vpop.f32.mrb[0].mxu0
  %v116 = vadd.f32 0.0, %v115
  %v117 = vpop.f32.mrb[0].mxu0
  %118 = vmatprep.mubr.f32.mxu0 0.0
  %119 = vmatmul.mubr.f32.gmra.mrb[0].mxu0 %v39
  %v120 = vpop.f32.mrb[0].mxu0
  %v121 = vadd.f32 0.0, %v120
  %v122 = vpop.f32.mrb[0].mxu0
  %123 = vmatprep.mubr.f32.mxu0 0.0
  %124 = vmatmul.mubr.f32.gmra.mrb[0].mxu0 %v42
  %v125 = vpop.f32.mrb[0].mxu0
  %v126 = vadd.f32 0.0, %v125
  %v127 = vpop.f32.mrb[0].mxu0
  %128 = vdwg.mxu0
  %v129 = vadd.f32 %v19, %v111
  %v130 = vadd.f32 %v20, %v116
  %v131 = vadd.f32 %v21, %v121
  %v132 = vadd.f32 %v22, %v126
  %133 = vst [vmem:[#allocation2] sm:$0xff] %v129
  %134 = vst [vmem:[#allocation2 + $0x8] sm:$0xff] %v130
  %135 = vst [vmem:[#allocation2 + $0x10] sm:$0xff] %v131
  %136 = vst [vmem:[#allocation2 + $0x18] sm:$0xff] %v132
  // Predicated region
  $region14: #{graph_convolution.2} parent=0 // pred_check
    %p137 = pneg %p11
  $region15: #{graph_convolution.2} parent=0 // pred_check_branch
    %139 = sbr.rel (%p137) target = $region17
  $region16: #{graph_convolution.2} parent=0 // pred_region
    %v140 = vld [vmem:[#allocation2] sm:$0xff]
    %v141 = vld [vmem:[#allocation2 + $0x8] sm:$0xff]
    %v142 = vld [vmem:[#allocation2 + $0x10] sm:$0xff]
    %v143 = vld [vmem:[#allocation2 + $0x18] sm:$0xff]
    %144 = vst [vmem:[%s2] sm:$0xff] %v140
    %145 = vst [vmem:[%s2 + $0x8] sm:$0xff] %v141
    %146 = vst [vmem:[%s2 + $0x10] sm:$0xff] %v142
    %147 = vst [vmem:[%s2 + $0x18] sm:$0xff] %v143
  $region17: #{graph_convolution.2} parent=0 // pred_fallthru
    _
  // Predicated region
  $region18: #{graph_convolution.2} parent=0 // pred_check
    _
  $region19: #{graph_convolution.2} parent=0 // pred_check_branch
    %149 = sbr.rel (0) target = $region21
  $region20: #{graph_convolution.2} parent=0 // pred_region
    _
  $region21: #{graph_convolution.2} parent=0 // pred_fallthru
    _
  // Predicated region
  $region22: #{graph_convolution.2} parent=0 // pred_check
    _
  $region23: #{graph_convolution.2} parent=0 // pred_check_branch
    %151 = sbr.rel (0) target = $region25
  $region24: #{graph_convolution.2} parent=0 // pred_region
    _
  $region25: #{graph_convolution.2} parent=0 // pred_fallthru
    _

</llo_original>
